<compile_context>
chip_gen: v6e
topology: v6e:2x2x1
jax: 0.10.0
libtpu: 0.0.40
codegen_flags: <defaults>
</compile_context>

<pallas_src>
import jax
import jax.numpy as jnp
from jax.experimental import pallas as pl
from jax.experimental.pallas import tpu as pltpu


def _round_up(x, m):
    return ((x + m - 1) // m) * m


# ---------------------------------------------------------------------------
# Fused kernel
# ---------------------------------------------------------------------------
def _make_fused_kernel(keys_sorted, layers_per_key, n_common, z_dim, pad_out):
    """Build the single fused kernel body (structure known at trace time)."""

    def kernel(*refs):
        it = iter(refs)
        x_refs = {k: next(it) for k in keys_sorted}
        indiv = {k: [(next(it), next(it)) for _ in range(layers_per_key[k])]
                 for k in keys_sorted}
        common = [(next(it), next(it)) for _ in range(n_common)]
        w_head_ref = next(it)
        b_head_ref = next(it)
        eps_ref = next(it)
        out_ref = next(it)

        def dense_relu(h, w_ref, b_ref):
            y = jnp.dot(h, w_ref[...], preferred_element_type=jnp.float32)
            return jnp.maximum(y + b_ref[...], 0.0)

        # per-key MLPs; concat stays in vregs (no HBM materialization)
        hs = []
        for k in keys_sorted:
            h = x_refs[k][...].astype(jnp.float32)
            for w_ref, b_ref in indiv[k]:
                h = dense_relu(h, w_ref, b_ref)
            hs.append(h)
        h = jnp.concatenate(hs, axis=-1)

        # common trunk
        for w_ref, b_ref in common:
            h = dense_relu(h, w_ref, b_ref)

        # fused mu|var head: single (Din, 2Z) matmul
        head = jnp.dot(h, w_head_ref[...],
                       preferred_element_type=jnp.float32) + b_head_ref[...]
        mu = head[:, :z_dim]
        pre = head[:, z_dim:]
        # numerically stable softplus: max(x,0) + log1p(exp(-|x|))
        var = jnp.maximum(pre, 0.0) + jnp.log1p(jnp.exp(-jnp.abs(pre))) + 1e-6
        z = mu + jnp.sqrt(var) * eps_ref[...]

        # lane-dense packed output slab: [z | mu | var | zero pad] -> one dense store
        packed = jnp.concatenate([z, mu, var], axis=-1)
        if pad_out > 3 * z_dim:
            pad = jnp.zeros((packed.shape[0], pad_out - 3 * z_dim), jnp.float32)
            packed = jnp.concatenate([packed, pad], axis=-1)
        out_ref[...] = packed.astype(out_ref.dtype)

    return kernel


# ---------------------------------------------------------------------------
# Forward pass (mirrors GaussianConcatStochasticEncoder.forward)
# ---------------------------------------------------------------------------
def forward(inputs, params, eps):
    keys_sorted = sorted(inputs.keys())
    B = next(iter(inputs.values())).shape[0]
    z_dim = eps.shape[1]

    # batch tiling: shard the batch across grid steps (and across v7x's 2 TCs);
    # at small B this degenerates to a single grid step.
    TB = 128 if (B > 128 and B % 128 == 0) else B
    grid = (B // TB,)

    pad_out = _round_up(max(3 * z_dim, 128), 128)

    flat_args = []
    in_specs = []

    # data inputs (tiled over batch)
    for k in keys_sorted:
        x = inputs[k]
        flat_args.append(x)
        in_specs.append(pl.BlockSpec((TB, x.shape[1]), lambda b: (b, 0)))

    # per-key weights (fully VMEM-resident, replicated across batch tiles)
    layers_per_key = {}
    for k in keys_sorted:
        layers = params["individual"][k]
        layers_per_key[k] = len(layers)
        for w, b in layers:
            flat_args += [w, b]
            in_specs += [pl.BlockSpec(w.shape, lambda i: (0, 0)),
                         pl.BlockSpec(b.shape, lambda i: (0, 0))]

    # common trunk weights
    for w, b in params["common"]:
        flat_args += [w, b]
        in_specs += [pl.BlockSpec(w.shape, lambda i: (0, 0)),
                     pl.BlockSpec(b.shape, lambda i: (0, 0))]

    # fused mu|var head weights
    w_head, b_head = params["head"]
    flat_args += [w_head, b_head]
    in_specs += [pl.BlockSpec(w_head.shape, lambda i: (0, 0)),
                 pl.BlockSpec(b_head.shape, lambda i: (0, 0))]

    # external reparameterization noise (tiled over batch)
    flat_args.append(eps)
    in_specs.append(pl.BlockSpec((TB, z_dim), lambda b: (b, 0)))

    kernel = _make_fused_kernel(keys_sorted, layers_per_key,
                                len(params["common"]), z_dim, pad_out)

    out = pl.pallas_call(
        kernel,
        out_shape=jax.ShapeDtypeStruct((B, pad_out), jnp.float32),
        grid=grid,
        in_specs=in_specs,
        out_specs=pl.BlockSpec((TB, pad_out), lambda b: (b, 0)),
        compiler_params=pltpu.CompilerParams(
            dimension_semantics=("parallel",)),
    )(*flat_args)

    z = out[:, :z_dim]
    mu = out[:, z_dim:2 * z_dim]
    var = out[:, 2 * z_dim:3 * z_dim]
    return z, mu, var


# ---------------------------------------------------------------------------
# Parameter construction (deterministic, synthetic)
# ---------------------------------------------------------------------------
def _init_linear(key, d_in, d_out):
    kw, kb = jax.random.split(key)
    scale = 1.0 / jnp.sqrt(jnp.float32(d_in))
    w = jax.random.normal(kw, (d_in, d_out), jnp.float32) * scale
    b = jax.random.normal(kb, (1, d_out), jnp.float32) * 0.01
    return w, b


def init_params(key, z_dim, individual_hidden_dims, common_hidden_dims, input_dims):
    params = {"individual": {}, "common": [], "head": None}
    keys_sorted = sorted(input_dims.keys())

    for input_key in keys_sorted:
        in_dim = input_dims[input_key]
        hdims = individual_hidden_dims[input_key]
        layers = []
        for d1, d2 in zip([in_dim] + hdims[:-1], hdims):
            key, sub = jax.random.split(key)
            layers.append(_init_linear(sub, d1, d2))
        params["individual"][input_key] = layers

    concat_dim = sum(individual_hidden_dims[k][-1] for k in keys_sorted)

    d_prev = concat_dim
    for d in common_hidden_dims:
        key, sub = jax.random.split(key)
        params["common"].append(_init_linear(sub, d_prev, d))
        d_prev = d

    key, k_mu, k_var = jax.random.split(key, 3)
    w_mu, b_mu = _init_linear(k_mu, d_prev, z_dim)
    w_var, b_var = _init_linear(k_var, d_prev, z_dim)
    # merged head: [w_mu | w_var] so the kernel does one matmul for mu & var
    params["head"] = (jnp.concatenate([w_mu, w_var], axis=1),
                      jnp.concatenate([b_mu, b_var], axis=1))
    return params


# ---------------------------------------------------------------------------
# Pure-JAX reference (for correctness checking only)
# ---------------------------------------------------------------------------
def reference_forward(inputs, params, eps, z_dim):
    hp = jax.lax.Precision.HIGHEST
    hs = []
    for k in sorted(inputs.keys()):
        h = inputs[k]
        for w, b in params["individual"][k]:
            h = jnp.maximum(jnp.dot(h, w, precision=hp) + b, 0.0)
        hs.append(h)
    h = jnp.concatenate(hs, axis=-1)
    for w, b in params["common"]:
        h = jnp.maximum(jnp.dot(h, w, precision=hp) + b, 0.0)
    w_head, b_head = params["head"]
    head = jnp.dot(h, w_head, precision=hp) + b_head
    mu = head[:, :z_dim]
    var = jax.nn.softplus(head[:, z_dim:]) + 1e-6
    z = mu + jnp.sqrt(var) * eps
    return z, mu, var


# ---------------------------------------------------------------------------
if __name__ == "__main__":
    B = 8
    z_dim = 8
    input_dims = {"img": 16, "state": 24}
    individual_hidden_dims = {"img": [32, 32], "state": [32, 16]}
    common_hidden_dims = [64, 32]

    root = jax.random.PRNGKey(0)
    k_params, k_img, k_state, k_eps = jax.random.split(root, 4)

    params = init_params(k_params, z_dim, individual_hidden_dims,
                         common_hidden_dims, input_dims)

    inputs = {
        "img": jax.random.normal(k_img, (B, input_dims["img"]), jnp.float32),
        "state": jax.random.normal(k_state, (B, input_dims["state"]), jnp.float32),
    }
    eps = jax.random.normal(k_eps, (B, z_dim), jnp.float32)

    z, mu, var = forward(inputs, params, eps)
    jax.block_until_ready((z, mu, var))

    assert z.shape == (B, z_dim) and mu.shape == (B, z_dim) and var.shape == (B, z_dim)
    assert bool(jnp.all(var > 0.0))

    z_r, mu_r, var_r = reference_forward(inputs, params, eps, z_dim)
    assert bool(jnp.allclose(mu, mu_r, atol=1e-2, rtol=1e-2))
    assert bool(jnp.allclose(var, var_r, atol=1e-2, rtol=1e-2))
    assert bool(jnp.allclose(z, z_r, atol=1e-2, rtol=1e-2))

    print("KERNEL_OK")
</pallas_src>

<mosaic_0001>
module attributes {stable_mosaic.version = 11 : i64} {
  func.func @kernel(%arg0: i32, %arg1: memref<8x16xf32, #tpu.memory_space<vmem>>, %arg2: memref<8x24xf32, #tpu.memory_space<vmem>>, %arg3: memref<16x32xf32, #tpu.memory_space<vmem>>, %arg4: memref<1x32xf32, #tpu.memory_space<vmem>>, %arg5: memref<32x32xf32, #tpu.memory_space<vmem>>, %arg6: memref<1x32xf32, #tpu.memory_space<vmem>>, %arg7: memref<24x32xf32, #tpu.memory_space<vmem>>, %arg8: memref<1x32xf32, #tpu.memory_space<vmem>>, %arg9: memref<32x16xf32, #tpu.memory_space<vmem>>, %arg10: memref<1x16xf32, #tpu.memory_space<vmem>>, %arg11: memref<48x64xf32, #tpu.memory_space<vmem>>, %arg12: memref<1x64xf32, #tpu.memory_space<vmem>>, %arg13: memref<64x32xf32, #tpu.memory_space<vmem>>, %arg14: memref<1x32xf32, #tpu.memory_space<vmem>>, %arg15: memref<32x16xf32, #tpu.memory_space<vmem>>, %arg16: memref<1x16xf32, #tpu.memory_space<vmem>>, %arg17: memref<8x8xf32, #tpu.memory_space<vmem>>, %arg18: memref<8x128xf32, #tpu.memory_space<vmem>>) attributes {dimension_semantics = [#tpu.dimension_semantics<parallel>], iteration_bounds = array<i64: 1>, scalar_prefetch = 0 : i64, scratch_operands = 0 : i64, tpu.core_type = #tpu.core_type<tc>, window_params = [{transform_indices = @transform_0, window_bounds = array<i64: 8, 16>}, {transform_indices = @transform_1, window_bounds = array<i64: 8, 24>}, {pipeline_mode = #tpu.pipeline_mode<synchronous>, transform_indices = @transform_2, window_bounds = array<i64: 16, 32>}, {pipeline_mode = #tpu.pipeline_mode<synchronous>, transform_indices = @transform_3, window_bounds = array<i64: 1, 32>}, {pipeline_mode = #tpu.pipeline_mode<synchronous>, transform_indices = @transform_4, window_bounds = array<i64: 32, 32>}, {pipeline_mode = #tpu.pipeline_mode<synchronous>, transform_indices = @transform_5, window_bounds = array<i64: 1, 32>}, {pipeline_mode = #tpu.pipeline_mode<synchronous>, transform_indices = @transform_6, window_bounds = array<i64: 24, 32>}, {pipeline_mode = #tpu.pipeline_mode<synchronous>, transform_indices = @transform_7, window_bounds = array<i64: 1, 32>}, {pipeline_mode = #tpu.pipeline_mode<synchronous>, transform_indices = @transform_8, window_bounds = array<i64: 32, 16>}, {pipeline_mode = #tpu.pipeline_mode<synchronous>, transform_indices = @transform_9, window_bounds = array<i64: 1, 16>}, {pipeline_mode = #tpu.pipeline_mode<synchronous>, transform_indices = @transform_10, window_bounds = array<i64: 48, 64>}, {pipeline_mode = #tpu.pipeline_mode<synchronous>, transform_indices = @transform_11, window_bounds = array<i64: 1, 64>}, {pipeline_mode = #tpu.pipeline_mode<synchronous>, transform_indices = @transform_12, window_bounds = array<i64: 64, 32>}, {pipeline_mode = #tpu.pipeline_mode<synchronous>, transform_indices = @transform_13, window_bounds = array<i64: 1, 32>}, {pipeline_mode = #tpu.pipeline_mode<synchronous>, transform_indices = @transform_14, window_bounds = array<i64: 32, 16>}, {pipeline_mode = #tpu.pipeline_mode<synchronous>, transform_indices = @transform_15, window_bounds = array<i64: 1, 16>}, {transform_indices = @transform_16, window_bounds = array<i64: 8, 8>}, {transform_indices = @transform_17, window_bounds = array<i64: 8, 128>}]} {
    %c0 = arith.constant 0 : index
    %c0_0 = arith.constant 0 : index
    %0 = vector.load %arg1[%c0, %c0_0] : memref<8x16xf32, #tpu.memory_space<vmem>>, vector<8x16xf32>
    %c0_1 = arith.constant 0 : index
    %c0_2 = arith.constant 0 : index
    %1 = vector.load %arg3[%c0_1, %c0_2] : memref<16x32xf32, #tpu.memory_space<vmem>>, vector<16x32xf32>
    %cst = arith.constant dense<0.000000e+00> : vector<8x32xf32>
    %2 = tpu.matmul %0, %1, %cst {dimension_numbers = #tpu.dot_dimension_numbers<[1], [0], [0], [1], [0, 0, 1, 1], [], []>} : vector<8x16xf32>, vector<16x32xf32>, vector<8x32xf32> -> vector<8x32xf32>
    %c0_3 = arith.constant 0 : index
    %c0_4 = arith.constant 0 : index
    %3 = vector.load %arg4[%c0_3, %c0_4] : memref<1x32xf32, #tpu.memory_space<vmem>>, vector<1x32xf32>
    %4 = vector.broadcast %3 : vector<1x32xf32> to vector<8x32xf32>
    %5 = arith.addf %2, %4 : vector<8x32xf32>
    %cst_5 = arith.constant 0.000000e+00 : f32
    %6 = vector.broadcast %cst_5 : f32 to vector<8x32xf32>
    %7 = arith.maximumf %5, %6 : vector<8x32xf32>
    %c0_6 = arith.constant 0 : index
    %c0_7 = arith.constant 0 : index
    %8 = vector.load %arg5[%c0_6, %c0_7] : memref<32x32xf32, #tpu.memory_space<vmem>>, vector<32x32xf32>
    %cst_8 = arith.constant dense<0.000000e+00> : vector<8x32xf32>
    %9 = tpu.matmul %7, %8, %cst_8 {dimension_numbers = #tpu.dot_dimension_numbers<[1], [0], [0], [1], [0, 0, 1, 1], [], []>} : vector<8x32xf32>, vector<32x32xf32>, vector<8x32xf32> -> vector<8x32xf32>
    %c0_9 = arith.constant 0 : index
    %c0_10 = arith.constant 0 : index
    %10 = vector.load %arg6[%c0_9, %c0_10] : memref<1x32xf32, #tpu.memory_space<vmem>>, vector<1x32xf32>
    %11 = vector.broadcast %10 : vector<1x32xf32> to vector<8x32xf32>
    %12 = arith.addf %9, %11 : vector<8x32xf32>
    %cst_11 = arith.constant 0.000000e+00 : f32
    %13 = vector.broadcast %cst_11 : f32 to vector<8x32xf32>
    %14 = arith.maximumf %12, %13 : vector<8x32xf32>
    %c0_12 = arith.constant 0 : index
    %c0_13 = arith.constant 0 : index
    %15 = vector.load %arg2[%c0_12, %c0_13] : memref<8x24xf32, #tpu.memory_space<vmem>>, vector<8x24xf32>
    %c0_14 = arith.constant 0 : index
    %c0_15 = arith.constant 0 : index
    %16 = vector.load %arg7[%c0_14, %c0_15] : memref<24x32xf32, #tpu.memory_space<vmem>>, vector<24x32xf32>
    %cst_16 = arith.constant dense<0.000000e+00> : vector<8x32xf32>
    %17 = tpu.matmul %15, %16, %cst_16 {dimension_numbers = #tpu.dot_dimension_numbers<[1], [0], [0], [1], [0, 0, 1, 1], [], []>} : vector<8x24xf32>, vector<24x32xf32>, vector<8x32xf32> -> vector<8x32xf32>
    %c0_17 = arith.constant 0 : index
    %c0_18 = arith.constant 0 : index
    %18 = vector.load %arg8[%c0_17, %c0_18] : memref<1x32xf32, #tpu.memory_space<vmem>>, vector<1x32xf32>
    %19 = vector.broadcast %18 : vector<1x32xf32> to vector<8x32xf32>
    %20 = arith.addf %17, %19 : vector<8x32xf32>
    %cst_19 = arith.constant 0.000000e+00 : f32
    %21 = vector.broadcast %cst_19 : f32 to vector<8x32xf32>
    %22 = arith.maximumf %20, %21 : vector<8x32xf32>
    %c0_20 = arith.constant 0 : index
    %c0_21 = arith.constant 0 : index
    %23 = vector.load %arg9[%c0_20, %c0_21] : memref<32x16xf32, #tpu.memory_space<vmem>>, vector<32x16xf32>
    %cst_22 = arith.constant dense<0.000000e+00> : vector<8x16xf32>
    %24 = tpu.matmul %22, %23, %cst_22 {dimension_numbers = #tpu.dot_dimension_numbers<[1], [0], [0], [1], [0, 0, 1, 1], [], []>} : vector<8x32xf32>, vector<32x16xf32>, vector<8x16xf32> -> vector<8x16xf32>
    %c0_23 = arith.constant 0 : index
    %c0_24 = arith.constant 0 : index
    %25 = vector.load %arg10[%c0_23, %c0_24] : memref<1x16xf32, #tpu.memory_space<vmem>>, vector<1x16xf32>
    %26 = vector.broadcast %25 : vector<1x16xf32> to vector<8x16xf32>
    %27 = arith.addf %24, %26 : vector<8x16xf32>
    %cst_25 = arith.constant 0.000000e+00 : f32
    %28 = vector.broadcast %cst_25 : f32 to vector<8x16xf32>
    %29 = arith.maximumf %27, %28 : vector<8x16xf32>
    %30 = tpu.concatenate %14, %29 in 1 : vector<8x32xf32>, vector<8x16xf32> -> vector<8x48xf32>
    %c0_26 = arith.constant 0 : index
    %c0_27 = arith.constant 0 : index
    %31 = vector.load %arg11[%c0_26, %c0_27] : memref<48x64xf32, #tpu.memory_space<vmem>>, vector<48x64xf32>
    %cst_28 = arith.constant dense<0.000000e+00> : vector<8x64xf32>
    %32 = tpu.matmul %30, %31, %cst_28 {dimension_numbers = #tpu.dot_dimension_numbers<[1], [0], [0], [1], [0, 0, 1, 1], [], []>} : vector<8x48xf32>, vector<48x64xf32>, vector<8x64xf32> -> vector<8x64xf32>
    %c0_29 = arith.constant 0 : index
    %c0_30 = arith.constant 0 : index
    %33 = vector.load %arg12[%c0_29, %c0_30] : memref<1x64xf32, #tpu.memory_space<vmem>>, vector<1x64xf32>
    %34 = vector.broadcast %33 : vector<1x64xf32> to vector<8x64xf32>
    %35 = arith.addf %32, %34 : vector<8x64xf32>
    %cst_31 = arith.constant 0.000000e+00 : f32
    %36 = vector.broadcast %cst_31 : f32 to vector<8x64xf32>
    %37 = arith.maximumf %35, %36 : vector<8x64xf32>
    %c0_32 = arith.constant 0 : index
    %c0_33 = arith.constant 0 : index
    %38 = vector.load %arg13[%c0_32, %c0_33] : memref<64x32xf32, #tpu.memory_space<vmem>>, vector<64x32xf32>
    %cst_34 = arith.constant dense<0.000000e+00> : vector<8x32xf32>
    %39 = tpu.matmul %37, %38, %cst_34 {dimension_numbers = #tpu.dot_dimension_numbers<[1], [0], [0], [1], [0, 0, 1, 1], [], []>} : vector<8x64xf32>, vector<64x32xf32>, vector<8x32xf32> -> vector<8x32xf32>
    %c0_35 = arith.constant 0 : index
    %c0_36 = arith.constant 0 : index
    %40 = vector.load %arg14[%c0_35, %c0_36] : memref<1x32xf32, #tpu.memory_space<vmem>>, vector<1x32xf32>
    %41 = vector.broadcast %40 : vector<1x32xf32> to vector<8x32xf32>
    %42 = arith.addf %39, %41 : vector<8x32xf32>
    %cst_37 = arith.constant 0.000000e+00 : f32
    %43 = vector.broadcast %cst_37 : f32 to vector<8x32xf32>
    %44 = arith.maximumf %42, %43 : vector<8x32xf32>
    %c0_38 = arith.constant 0 : index
    %c0_39 = arith.constant 0 : index
    %45 = vector.load %arg15[%c0_38, %c0_39] : memref<32x16xf32, #tpu.memory_space<vmem>>, vector<32x16xf32>
    %cst_40 = arith.constant dense<0.000000e+00> : vector<8x16xf32>
    %46 = tpu.matmul %44, %45, %cst_40 {dimension_numbers = #tpu.dot_dimension_numbers<[1], [0], [0], [1], [0, 0, 1, 1], [], []>} : vector<8x32xf32>, vector<32x16xf32>, vector<8x16xf32> -> vector<8x16xf32>
    %c0_41 = arith.constant 0 : index
    %c0_42 = arith.constant 0 : index
    %47 = vector.load %arg16[%c0_41, %c0_42] : memref<1x16xf32, #tpu.memory_space<vmem>>, vector<1x16xf32>
    %48 = vector.broadcast %47 : vector<1x16xf32> to vector<8x16xf32>
    %49 = arith.addf %46, %48 : vector<8x16xf32>
    %50 = vector.extract_strided_slice %49 {offsets = [0, 0], sizes = [8, 8], strides = [1, 1]} : vector<8x16xf32> to vector<8x8xf32>
    %51 = vector.extract_strided_slice %49 {offsets = [0, 8], sizes = [8, 8], strides = [1, 1]} : vector<8x16xf32> to vector<8x8xf32>
    %cst_43 = arith.constant 0.000000e+00 : f32
    %52 = vector.broadcast %cst_43 : f32 to vector<8x8xf32>
    %53 = arith.maximumf %51, %52 : vector<8x8xf32>
    %54 = math.absf %51 : vector<8x8xf32>
    %cst_44 = arith.constant 0.000000e+00 : f32
    %55 = vector.broadcast %cst_44 : f32 to vector<8x8xf32>
    %56 = arith.subf %55, %54 : vector<8x8xf32>
    %57 = math.exp %56 : vector<8x8xf32>
    %58 = math.log1p %57 : vector<8x8xf32>
    %59 = arith.addf %53, %58 : vector<8x8xf32>
    %cst_45 = arith.constant 9.99999997E-7 : f32
    %60 = vector.broadcast %cst_45 : f32 to vector<8x8xf32>
    %61 = arith.addf %59, %60 : vector<8x8xf32>
    %62 = math.sqrt %61 : vector<8x8xf32>
    %c0_46 = arith.constant 0 : index
    %c0_47 = arith.constant 0 : index
    %63 = vector.load %arg17[%c0_46, %c0_47] : memref<8x8xf32, #tpu.memory_space<vmem>>, vector<8x8xf32>
    %64 = arith.mulf %62, %63 : vector<8x8xf32>
    %65 = arith.addf %50, %64 : vector<8x8xf32>
    %66 = tpu.concatenate %65, %50, %61 in 1 : vector<8x8xf32>, vector<8x8xf32>, vector<8x8xf32> -> vector<8x24xf32>
    %cst_48 = arith.constant 0.000000e+00 : f32
    %67 = vector.broadcast %cst_48 : f32 to vector<8x104xf32>
    %68 = tpu.concatenate %66, %67 in 1 : vector<8x24xf32>, vector<8x104xf32> -> vector<8x128xf32>
    %c0_49 = arith.constant 0 : index
    %c0_50 = arith.constant 0 : index
    %69 = vector.load %arg18[%c0_49, %c0_50] : memref<8x128xf32, #tpu.memory_space<vmem>>, vector<8x128xf32>
    tpu.vector_store %arg18[%c0_49, %c0_50], %68 {strides = array<i32>} : memref<8x128xf32, #tpu.memory_space<vmem>>, vector<8x128xf32>,
    return
  }
  func.func @transform_0(%arg0: i32) -> (i32, i32) {
    %c0_i32 = arith.constant 0 : i32
    %c0_i32_0 = arith.constant 0 : i32
    return %arg0, %c0_i32 : i32, i32
  }
  func.func @transform_1(%arg0: i32) -> (i32, i32) {
    %c0_i32 = arith.constant 0 : i32
    %c0_i32_0 = arith.constant 0 : i32
    return %arg0, %c0_i32 : i32, i32
  }
  func.func @transform_2(%arg0: i32) -> (i32, i32) {
    %c0_i32 = arith.constant 0 : i32
    %c0_i32_0 = arith.constant 0 : i32
    %c0_i32_1 = arith.constant 0 : i32
    return %c0_i32, %c0_i32_0 : i32, i32
  }
  func.func @transform_3(%arg0: i32) -> (i32, i32) {
    %c0_i32 = arith.constant 0 : i32
    %c0_i32_0 = arith.constant 0 : i32
    %c0_i32_1 = arith.constant 0 : i32
    return %c0_i32, %c0_i32_0 : i32, i32
  }
  func.func @transform_4(%arg0: i32) -> (i32, i32) {
    %c0_i32 = arith.constant 0 : i32
    %c0_i32_0 = arith.constant 0 : i32
    %c0_i32_1 = arith.constant 0 : i32
    return %c0_i32, %c0_i32_0 : i32, i32
  }
  func.func @transform_5(%arg0: i32) -> (i32, i32) {
    %c0_i32 = arith.constant 0 : i32
    %c0_i32_0 = arith.constant 0 : i32
    %c0_i32_1 = arith.constant 0 : i32
    return %c0_i32, %c0_i32_0 : i32, i32
  }
  func.func @transform_6(%arg0: i32) -> (i32, i32) {
    %c0_i32 = arith.constant 0 : i32
    %c0_i32_0 = arith.constant 0 : i32
    %c0_i32_1 = arith.constant 0 : i32
    return %c0_i32, %c0_i32_0 : i32, i32
  }
  func.func @transform_7(%arg0: i32) -> (i32, i32) {
    %c0_i32 = arith.constant 0 : i32
    %c0_i32_0 = arith.constant 0 : i32
    %c0_i32_1 = arith.constant 0 : i32
    return %c0_i32, %c0_i32_0 : i32, i32
  }
  func.func @transform_8(%arg0: i32) -> (i32, i32) {
    %c0_i32 = arith.constant 0 : i32
    %c0_i32_0 = arith.constant 0 : i32
    %c0_i32_1 = arith.constant 0 : i32
    return %c0_i32, %c0_i32_0 : i32, i32
  }
  func.func @transform_9(%arg0: i32) -> (i32, i32) {
    %c0_i32 = arith.constant 0 : i32
    %c0_i32_0 = arith.constant 0 : i32
    %c0_i32_1 = arith.constant 0 : i32
    return %c0_i32, %c0_i32_0 : i32, i32
  }
  func.func @transform_10(%arg0: i32) -> (i32, i32) {
    %c0_i32 = arith.constant 0 : i32
    %c0_i32_0 = arith.constant 0 : i32
    %c0_i32_1 = arith.constant 0 : i32
    return %c0_i32, %c0_i32_0 : i32, i32
  }
  func.func @transform_11(%arg0: i32) -> (i32, i32) {
    %c0_i32 = arith.constant 0 : i32
    %c0_i32_0 = arith.constant 0 : i32
    %c0_i32_1 = arith.constant 0 : i32
    return %c0_i32, %c0_i32_0 : i32, i32
  }
  func.func @transform_12(%arg0: i32) -> (i32, i32) {
    %c0_i32 = arith.constant 0 : i32
    %c0_i32_0 = arith.constant 0 : i32
    %c0_i32_1 = arith.constant 0 : i32
    return %c0_i32, %c0_i32_0 : i32, i32
  }
  func.func @transform_13(%arg0: i32) -> (i32, i32) {
    %c0_i32 = arith.constant 0 : i32
    %c0_i32_0 = arith.constant 0 : i32
    %c0_i32_1 = arith.constant 0 : i32
    return %c0_i32, %c0_i32_0 : i32, i32
  }
  func.func @transform_14(%arg0: i32) -> (i32, i32) {
    %c0_i32 = arith.constant 0 : i32
    %c0_i32_0 = arith.constant 0 : i32
    %c0_i32_1 = arith.constant 0 : i32
    return %c0_i32, %c0_i32_0 : i32, i32
  }
  func.func @transform_15(%arg0: i32) -> (i32, i32) {
    %c0_i32 = arith.constant 0 : i32
    %c0_i32_0 = arith.constant 0 : i32
    %c0_i32_1 = arith.constant 0 : i32
    return %c0_i32, %c0_i32_0 : i32, i32
  }
  func.func @transform_16(%arg0: i32) -> (i32, i32) {
    %c0_i32 = arith.constant 0 : i32
    %c0_i32_0 = arith.constant 0 : i32
    return %arg0, %c0_i32 : i32, i32
  }
  func.func @transform_17(%arg0: i32) -> (i32, i32) {
    %c0_i32 = arith.constant 0 : i32
    %c0_i32_0 = arith.constant 0 : i32
    return %arg0, %c0_i32 : i32, i32
  }
}

</mosaic_0001>

<llo_original>
// kernel: tpu_custom_call.1
$region0: #{tpu_custom_call.1}
  #allocation0 [shape = 'u32[]', space=smem, size = 0x4, offset = 0x4, fixed_abs, tag = 'smem constant byte address 0x4 - core index']
  #allocation1 [shape = 'u32[144,128]{1,0:T(1,128)}', space=vmem, size = 0x12000, scoped, tag = 'internal scratch']
  %s0 = inlined_call_operand.vmem [shape: f32[8,16], index: 0, kind: input, shape index: {}]
  %s1 = inlined_call_operand.vmem [shape: f32[8,24], index: 1, kind: input, shape index: {}]
  %s2 = inlined_call_operand.vmem [shape: f32[16,32], index: 2, kind: input, shape index: {}]
  %s3 = inlined_call_operand.vmem [shape: f32[1,32], index: 3, kind: input, shape index: {}]
  %s4 = inlined_call_operand.vmem [shape: f32[32,32], index: 4, kind: input, shape index: {}]
  %s5 = inlined_call_operand.vmem [shape: f32[1,32], index: 5, kind: input, shape index: {}]
  %s6 = inlined_call_operand.vmem [shape: f32[24,32], index: 6, kind: input, shape index: {}]
  %s7 = inlined_call_operand.vmem [shape: f32[1,32], index: 7, kind: input, shape index: {}]
  %s8 = inlined_call_operand.vmem [shape: f32[32,16], index: 8, kind: input, shape index: {}]
  %s9 = inlined_call_operand.vmem [shape: f32[1,16], index: 9, kind: input, shape index: {}]
  %s10 = inlined_call_operand.vmem [shape: f32[48,64], index: 10, kind: input, shape index: {}]
  %s11 = inlined_call_operand.vmem [shape: f32[1,64], index: 11, kind: input, shape index: {}]
  %s12 = inlined_call_operand.vmem [shape: f32[64,32], index: 12, kind: input, shape index: {}]
  %s13 = inlined_call_operand.vmem [shape: f32[1,32], index: 13, kind: input, shape index: {}]
  %s14 = inlined_call_operand.vmem [shape: f32[32,16], index: 14, kind: input, shape index: {}]
  %s15 = inlined_call_operand.vmem [shape: f32[1,16], index: 15, kind: input, shape index: {}]
  %s16 = inlined_call_operand.vmem [shape: f32[8,8], index: 16, kind: input, shape index: {}]
  %s17 = inlined_call_operand.hbm [shape: f32[8,128], index: 17, kind: output, shape index: {}]
  %s18 = sld [smem:[#allocation0]]
  $region78: #{tpu_custom_call.1} parent=0
    _
  %s20 = ssub.s32 1, %s18
  %s21 = scalar_select 0, %s20, %s18
  $region1: #{tpu_custom_call.1} parent=0
    #allocation2 [shape = 'u8[4096]{0}', space=vmem, size = 0x1000, scoped, tag = 'output window, operand 0, single buffered']
    #allocation3 [shape = 's32[1]{0}', space=sflag, size = 0x4, scoped, tag = 'scoped memory for tpu_custom_call.1']
    %22 = vsyncpa [#allocation3], 0
    // Predicated region
    $region2: #{tpu_custom_call.1} parent=1 // pred_check
      _
    $region3: #{tpu_custom_call.1} parent=1 // pred_check_branch
      %24 = sbr.rel (0) target = $region5
    $region4: #{tpu_custom_call.1} parent=1 // pred_region
      _
    $region5: #{tpu_custom_call.1} parent=1 // pred_fallthru
      _
    // Predicated region
    $region6: #{tpu_custom_call.1} parent=1 // pred_check
      _
    $region7: #{tpu_custom_call.1} parent=1 // pred_check_branch
      %26 = sbr.rel (0) target = $region9
    $region8: #{tpu_custom_call.1} parent=1 // pred_region
      _
    $region9: #{tpu_custom_call.1} parent=1 // pred_fallthru
      _
    // Predicated region
    $region10: #{tpu_custom_call.1} parent=1 // pred_check
      _
    $region11: #{tpu_custom_call.1} parent=1 // pred_check_branch
      %28 = sbr.rel (0) target = $region13
    $region12: #{tpu_custom_call.1} parent=1 // pred_region
      _
    $region13: #{tpu_custom_call.1} parent=1 // pred_fallthru
      _
    // Predicated region
    $region14: #{tpu_custom_call.1} parent=1 // pred_check
      _
    $region15: #{tpu_custom_call.1} parent=1 // pred_check_branch
      %30 = sbr.rel (0) target = $region17
    $region16: #{tpu_custom_call.1} parent=1 // pred_region
      _
    $region17: #{tpu_custom_call.1} parent=1 // pred_fallthru
      _
    // Predicated region
    $region18: #{tpu_custom_call.1} parent=1 // pred_check
      _
    $region19: #{tpu_custom_call.1} parent=1 // pred_check_branch
      %32 = sbr.rel (0) target = $region21
    $region20: #{tpu_custom_call.1} parent=1 // pred_region
      _
    $region21: #{tpu_custom_call.1} parent=1 // pred_fallthru
      _
    // Predicated region
    $region22: #{tpu_custom_call.1} parent=1 // pred_check
      _
    $region23: #{tpu_custom_call.1} parent=1 // pred_check_branch
      %34 = sbr.rel (0) target = $region25
    $region24: #{tpu_custom_call.1} parent=1 // pred_region
      _
    $region25: #{tpu_custom_call.1} parent=1 // pred_fallthru
      _
    // Predicated region
    $region26: #{tpu_custom_call.1} parent=1 // pred_check
      _
    $region27: #{tpu_custom_call.1} parent=1 // pred_check_branch
      %36 = sbr.rel (0) target = $region29
    $region28: #{tpu_custom_call.1} parent=1 // pred_region
      _
    $region29: #{tpu_custom_call.1} parent=1 // pred_fallthru
      _
    // Predicated region
    $region30: #{tpu_custom_call.1} parent=1 // pred_check
      _
    $region31: #{tpu_custom_call.1} parent=1 // pred_check_branch
      %38 = sbr.rel (0) target = $region33
    $region32: #{tpu_custom_call.1} parent=1 // pred_region
      _
    $region33: #{tpu_custom_call.1} parent=1 // pred_fallthru
      _
    // Predicated region
    $region34: #{tpu_custom_call.1} parent=1 // pred_check
      _
    $region35: #{tpu_custom_call.1} parent=1 // pred_check_branch
      %40 = sbr.rel (0) target = $region37
    $region36: #{tpu_custom_call.1} parent=1 // pred_region
      _
    $region37: #{tpu_custom_call.1} parent=1 // pred_fallthru
      _
    // Predicated region
    $region38: #{tpu_custom_call.1} parent=1 // pred_check
      _
    $region39: #{tpu_custom_call.1} parent=1 // pred_check_branch
      %42 = sbr.rel (0) target = $region41
    $region40: #{tpu_custom_call.1} parent=1 // pred_region
      _
    $region41: #{tpu_custom_call.1} parent=1 // pred_fallthru
      _
    // Predicated region
    $region42: #{tpu_custom_call.1} parent=1 // pred_check
      _
    $region43: #{tpu_custom_call.1} parent=1 // pred_check_branch
      %44 = sbr.rel (0) target = $region45
    $region44: #{tpu_custom_call.1} parent=1 // pred_region
      _
    $region45: #{tpu_custom_call.1} parent=1 // pred_fallthru
      _
    // Predicated region
    $region46: #{tpu_custom_call.1} parent=1 // pred_check
      _
    $region47: #{tpu_custom_call.1} parent=1 // pred_check_branch
      %46 = sbr.rel (0) target = $region49
    $region48: #{tpu_custom_call.1} parent=1 // pred_region
      _
    $region49: #{tpu_custom_call.1} parent=1 // pred_fallthru
      _
    // Predicated region
    $region50: #{tpu_custom_call.1} parent=1 // pred_check
      _
    $region51: #{tpu_custom_call.1} parent=1 // pred_check_branch
      %48 = sbr.rel (0) target = $region53
    $region52: #{tpu_custom_call.1} parent=1 // pred_region
      _
    $region53: #{tpu_custom_call.1} parent=1 // pred_fallthru
      _
    // Predicated region
    $region54: #{tpu_custom_call.1} parent=1 // pred_check
      _
    $region55: #{tpu_custom_call.1} parent=1 // pred_check_branch
      %50 = sbr.rel (0) target = $region57
    $region56: #{tpu_custom_call.1} parent=1 // pred_region
      _
    $region57: #{tpu_custom_call.1} parent=1 // pred_fallthru
      _
    // Predicated region
    $region58: #{tpu_custom_call.1} parent=1 // pred_check
      _
    $region59: #{tpu_custom_call.1} parent=1 // pred_check_branch
      %52 = sbr.rel (0) target = $region61
    $region60: #{tpu_custom_call.1} parent=1 // pred_region
      _
    $region61: #{tpu_custom_call.1} parent=1 // pred_fallthru
      _
    // Predicated region
    $region62: #{tpu_custom_call.1} parent=1 // pred_check
      _
    $region63: #{tpu_custom_call.1} parent=1 // pred_check_branch
      %54 = sbr.rel (0) target = $region65
    $region64: #{tpu_custom_call.1} parent=1 // pred_region
      _
    $region65: #{tpu_custom_call.1} parent=1 // pred_fallthru
      _
    // Predicated region
    $region66: #{tpu_custom_call.1} parent=1 // pred_check
      _
    $region67: #{tpu_custom_call.1} parent=1 // pred_check_branch
      %56 = sbr.rel (0) target = $region69
    $region68: #{tpu_custom_call.1} parent=1 // pred_region
      _
    $region69: #{tpu_custom_call.1} parent=1 // pred_fallthru
      _
    %v57 = vld [vmem:[%s0] sm:$0xff]
    %v58 = vld [vmem:[%s2] sm:$0xff]
    %v59 = vld [vmem:[%s2 + $0x8] sm:$0xff]
    %v60 = vld [vmem:[%s3] sm:$0x1]
    %v62 = vlaneseq
    %v63 = vshrl.u32 %v62, 7
    %v64 = vsub.s32 0, %v63
    %v65 = vrot.slane %v60, %v64
    %vm67 = vcmask 130048
    %v69 = vsel %vm67, %v57, 0
    %71 = vmatprep.subr.mxu0 0.0
    %72 = vmatpush1.msra.mxu0 0.0
    %73 = vmatprep.subr.mxu0 0.0
    %74 = vmatpush1.msra.mxu0 0.0
    %75 = vmatprep.subr.mxu0 0.0
    %76 = vmatpush1.msra.mxu0 0.0
    %77 = vmatprep.subr.mxu0 0.0
    %78 = vmatpush1.msra.mxu0 0.0
    %79 = vmatprep.subr.mxu0 0.0
    %80 = vmatpush1.msra.mxu0 0.0
    %81 = vmatprep.subr.mxu0 0.0
    %82 = vmatpush1.msra.mxu0 0.0
    %83 = vmatprep.subr.mxu0 0.0
    %84 = vmatpush1.msra.mxu0 0.0
    %85 = vmatprep.subr.mxu0 0.0
    %86 = vmatpush1.msra.mxu0 0.0
    %87 = vmatprep.subr.mxu0 0.0
    %88 = vmatpush1.msra.mxu0 0.0
    %89 = vmatprep.subr.mxu0 0.0
    %90 = vmatpush1.msra.mxu0 0.0
    %91 = vmatprep.subr.mxu0 0.0
    %92 = vmatpush1.msra.mxu0 0.0
    %93 = vmatprep.subr.mxu0 0.0
    %94 = vmatpush1.msra.mxu0 0.0
    %95 = vmatprep.subr.mxu0 0.0
    %96 = vmatpush1.msra.mxu0 0.0
    %97 = vmatprep.subr.mxu0 0.0
    %98 = vmatpush1.msra.mxu0 0.0
    %99 = vmatprep.subr.mxu0 0.0
    %100 = vmatpush1.msra.mxu0 %v59
    %101 = vmatprep.subr.mxu0 0.0
    %102 = vmatpush1.msra.mxu0 %v58
    %103 = vmatprep.subr.mxu0 0.0
    %104 = vmatpush2.msra.mxu0 0.0
    %105 = vmatprep.subr.mxu0 0.0
    %106 = vmatpush2.msra.mxu0 0.0
    %107 = vmatprep.subr.mxu0 0.0
    %108 = vmatpush2.msra.mxu0 0.0
    %109 = vmatprep.subr.mxu0 0.0
    %110 = vmatpush2.msra.mxu0 0.0
    %111 = vmatprep.subr.mxu0 0.0
    %112 = vmatpush2.msra.mxu0 0.0
    %113 = vmatprep.subr.mxu0 0.0
    %114 = vmatpush2.msra.mxu0 0.0
    %115 = vmatprep.subr.mxu0 0.0
    %116 = vmatpush2.msra.mxu0 0.0
    %117 = vmatprep.subr.mxu0 0.0
    %118 = vmatpush2.msra.mxu0 0.0
    %119 = vmatprep.subr.mxu0 0.0
    %120 = vmatpush2.msra.mxu0 0.0
    %121 = vmatprep.subr.mxu0 0.0
    %122 = vmatpush2.msra.mxu0 0.0
    %123 = vmatprep.subr.mxu0 0.0
    %124 = vmatpush2.msra.mxu0 0.0
    %125 = vmatprep.subr.mxu0 0.0
    %126 = vmatpush2.msra.mxu0 0.0
    %127 = vmatprep.subr.mxu0 0.0
    %128 = vmatpush2.msra.mxu0 0.0
    %129 = vmatprep.subr.mxu0 0.0
    %130 = vmatpush2.msra.mxu0 0.0
    %131 = vmatprep.subr.mxu0 0.0
    %132 = vmatpush2.msra.mxu0 0.0
    %133 = vmatprep.subr.mxu0 0.0
    %134 = vmatpush2.msra.mxu0 0.0
    %135 = vmatprep.mubr.f32.mxu0 0.0
    %136 = vmatmul.mubr.f32.gmra.mxu0 %v69
    %v137 = vpop.f32.mrf.mxu0
    %v138 = vadd.f32 %v65, %v137
    %v139 = vpop.f32.mrf.mxu0
    %140 = vdwg.mxu0
    %v141 = vmax.f32 %v138, 0.0
    %v142 = vld [vmem:[%s4] sm:$0xff]
    %v143 = vld [vmem:[%s4 + $0x8] sm:$0xff]
    %v144 = vld [vmem:[%s4 + $0x10] sm:$0xff]
    %v145 = vld [vmem:[%s4 + $0x18] sm:$0xff]
    %v146 = vld [vmem:[%s5] sm:$0x1]
    %v148 = vlaneseq
    %v149 = vshrl.u32 %v148, 7
    %v150 = vsub.s32 0, %v149
    %v151 = vrot.slane %v146, %v150
    %vm153 = vcmask 261120
    %v155 = vsel %vm153, %v141, 0
    %157 = vmatprep.subr.mxu0 0.0
    %158 = vmatpush1.msra.mxu0 0.0
    %159 = vmatprep.subr.mxu0 0.0
    %160 = vmatpush1.msra.mxu0 0.0
    %161 = vmatprep.subr.mxu0 0.0
    %162 = vmatpush1.msra.mxu0 0.0
    %163 = vmatprep.subr.mxu0 0.0
    %164 = vmatpush1.msra.mxu0 0.0
    %165 = vmatprep.subr.mxu0 0.0
    %166 = vmatpush1.msra.mxu0 0.0
    %167 = vmatprep.subr.mxu0 0.0
    %168 = vmatpush1.msra.mxu0 0.0
    %169 = vmatprep.subr.mxu0 0.0
    %170 = vmatpush1.msra.mxu0 0.0
    %171 = vmatprep.subr.mxu0 0.0
    %172 = vmatpush1.msra.mxu0 0.0
    %173 = vmatprep.subr.mxu0 0.0
    %174 = vmatpush1.msra.mxu0 0.0
    %175 = vmatprep.subr.mxu0 0.0
    %176 = vmatpush1.msra.mxu0 0.0
    %177 = vmatprep.subr.mxu0 0.0
    %178 = vmatpush1.msra.mxu0 0.0
    %179 = vmatprep.subr.mxu0 0.0
    %180 = vmatpush1.msra.mxu0 0.0
    %181 = vmatprep.subr.mxu0 0.0
    %182 = vmatpush1.msra.mxu0 %v145
    %183 = vmatprep.subr.mxu0 0.0
    %184 = vmatpush1.msra.mxu0 %v144
    %185 = vmatprep.subr.mxu0 0.0
    %186 = vmatpush1.msra.mxu0 %v143
    %187 = vmatprep.subr.mxu0 0.0
    %188 = vmatpush1.msra.mxu0 %v142
    %189 = vmatprep.subr.mxu0 0.0
    %190 = vmatpush2.msra.mxu0 0.0
    %191 = vmatprep.subr.mxu0 0.0
    %192 = vmatpush2.msra.mxu0 0.0
    %193 = vmatprep.subr.mxu0 0.0
    %194 = vmatpush2.msra.mxu0 0.0
    %195 = vmatprep.subr.mxu0 0.0
    %196 = vmatpush2.msra.mxu0 0.0
    %197 = vmatprep.subr.mxu0 0.0
    %198 = vmatpush2.msra.mxu0 0.0
    %199 = vmatprep.subr.mxu0 0.0
    %200 = vmatpush2.msra.mxu0 0.0
    %201 = vmatprep.subr.mxu0 0.0
    %202 = vmatpush2.msra.mxu0 0.0
    %203 = vmatprep.subr.mxu0 0.0
    %204 = vmatpush2.msra.mxu0 0.0
    %205 = vmatprep.subr.mxu0 0.0
    %206 = vmatpush2.msra.mxu0 0.0
    %207 = vmatprep.subr.mxu0 0.0
    %208 = vmatpush2.msra.mxu0 0.0
    %209 = vmatprep.subr.mxu0 0.0
    %210 = vmatpush2.msra.mxu0 0.0
    %211 = vmatprep.subr.mxu0 0.0
    %212 = vmatpush2.msra.mxu0 0.0
    %213 = vmatprep.subr.mxu0 0.0
    %214 = vmatpush2.msra.mxu0 0.0
    %215 = vmatprep.subr.mxu0 0.0
    %216 = vmatpush2.msra.mxu0 0.0
    %217 = vmatprep.subr.mxu0 0.0
    %218 = vmatpush2.msra.mxu0 0.0
    %219 = vmatprep.subr.mxu0 0.0
    %220 = vmatpush2.msra.mxu0 0.0
    %221 = vmatprep.mubr.f32.mxu0 0.0
    %222 = vmatmul.mubr.f32.gmra.mxu0 %v155
    %v223 = vpop.f32.mrf.mxu0
    %v224 = vadd.f32 %v151, %v223
    %v225 = vpop.f32.mrf.mxu0
    %226 = vdwg.mxu0
    %v227 = vmax.f32 %v224, 0.0
    %v228 = vld [vmem:[%s1] sm:$0xff]
    %v229 = vld [vmem:[%s6] sm:$0xff]
    %v230 = vld [vmem:[%s6 + $0x8] sm:$0xff]
    %v231 = vld [vmem:[%s6 + $0x10] sm:$0xff]
    %v232 = vld [vmem:[%s7] sm:$0x1]
    %v234 = vlaneseq
    %v235 = vshrl.u32 %v234, 7
    %v236 = vsub.s32 0, %v235
    %v237 = vrot.slane %v232, %v236
    %vm239 = vcmask 195584
    %v241 = vsel %vm239, %v228, 0
    %243 = vmatprep.subr.mxu0 0.0
    %244 = vmatpush1.msra.mxu0 0.0
    %245 = vmatprep.subr.mxu0 0.0
    %246 = vmatpush1.msra.mxu0 0.0
    %247 = vmatprep.subr.mxu0 0.0
    %248 = vmatpush1.msra.mxu0 0.0
    %249 = vmatprep.subr.mxu0 0.0
    %250 = vmatpush1.msra.mxu0 0.0
    %251 = vmatprep.subr.mxu0 0.0
    %252 = vmatpush1.msra.mxu0 0.0
    %253 = vmatprep.subr.mxu0 0.0
    %254 = vmatpush1.msra.mxu0 0.0
    %255 = vmatprep.subr.mxu0 0.0
    %256 = vmatpush1.msra.mxu0 0.0
    %257 = vmatprep.subr.mxu0 0.0
    %258 = vmatpush1.msra.mxu0 0.0
    %259 = vmatprep.subr.mxu0 0.0
    %260 = vmatpush1.msra.mxu0 0.0
    %261 = vmatprep.subr.mxu0 0.0
    %262 = vmatpush1.msra.mxu0 0.0
    %263 = vmatprep.subr.mxu0 0.0
    %264 = vmatpush1.msra.mxu0 0.0
    %265 = vmatprep.subr.mxu0 0.0
    %266 = vmatpush1.msra.mxu0 0.0
    %267 = vmatprep.subr.mxu0 0.0
    %268 = vmatpush1.msra.mxu0 0.0
    %269 = vmatprep.subr.mxu0 0.0
    %270 = vmatpush1.msra.mxu0 %v231
    %271 = vmatprep.subr.mxu0 0.0
    %272 = vmatpush1.msra.mxu0 %v230
    %273 = vmatprep.subr.mxu0 0.0
    %274 = vmatpush1.msra.mxu0 %v229
    %275 = vmatprep.subr.mxu0 0.0
    %276 = vmatpush2.msra.mxu0 0.0
    %277 = vmatprep.subr.mxu0 0.0
    %278 = vmatpush2.msra.mxu0 0.0
    %279 = vmatprep.subr.mxu0 0.0
    %280 = vmatpush2.msra.mxu0 0.0
    %281 = vmatprep.subr.mxu0 0.0
    %282 = vmatpush2.msra.mxu0 0.0
    %283 = vmatprep.subr.mxu0 0.0
    %284 = vmatpush2.msra.mxu0 0.0
    %285 = vmatprep.subr.mxu0 0.0
    %286 = vmatpush2.msra.mxu0 0.0
    %287 = vmatprep.subr.mxu0 0.0
    %288 = vmatpush2.msra.mxu0 0.0
    %289 = vmatprep.subr.mxu0 0.0
    %290 = vmatpush2.msra.mxu0 0.0
    %291 = vmatprep.subr.mxu0 0.0
    %292 = vmatpush2.msra.mxu0 0.0
    %293 = vmatprep.subr.mxu0 0.0
    %294 = vmatpush2.msra.mxu0 0.0
    %295 = vmatprep.subr.mxu0 0.0
    %296 = vmatpush2.msra.mxu0 0.0
    %297 = vmatprep.subr.mxu0 0.0
    %298 = vmatpush2.msra.mxu0 0.0
    %299 = vmatprep.subr.mxu0 0.0
    %300 = vmatpush2.msra.mxu0 0.0
    %301 = vmatprep.subr.mxu0 0.0
    %302 = vmatpush2.msra.mxu0 0.0
    %303 = vmatprep.subr.mxu0 0.0
    %304 = vmatpush2.msra.mxu0 0.0
    %305 = vmatprep.subr.mxu0 0.0
    %306 = vmatpush2.msra.mxu0 0.0
    %307 = vmatprep.mubr.f32.mxu0 0.0
    %308 = vmatmul.mubr.f32.gmra.mxu0 %v241
    %v309 = vpop.f32.mrf.mxu0
    %v310 = vadd.f32 %v237, %v309
    %v311 = vpop.f32.mrf.mxu0
    %312 = vdwg.mxu0
    %v313 = vmax.f32 %v310, 0.0
    %v314 = vld [vmem:[%s8] sm:$0xff]
    %v315 = vld [vmem:[%s8 + $0x8] sm:$0xff]
    %v316 = vld [vmem:[%s8 + $0x10] sm:$0xff]
    %v317 = vld [vmem:[%s8 + $0x18] sm:$0xff]
    %v318 = vld [vmem:[%s9] sm:$0x1]
    %v320 = vlaneseq
    %v321 = vshrl.u32 %v320, 7
    %v322 = vsub.s32 0, %v321
    %v323 = vrot.slane %v318, %v322
    %v326 = vsel %vm153, %v313, 0
    %328 = vmatprep.subr.mxu0 0.0
    %329 = vmatpush1.msra.mxu0 0.0
    %330 = vmatprep.subr.mxu0 0.0
    %331 = vmatpush1.msra.mxu0 0.0
    %332 = vmatprep.subr.mxu0 0.0
    %333 = vmatpush1.msra.mxu0 0.0
    %334 = vmatprep.subr.mxu0 0.0
    %335 = vmatpush1.msra.mxu0 0.0
    %336 = vmatprep.subr.mxu0 0.0
    %337 = vmatpush1.msra.mxu0 0.0
    %338 = vmatprep.subr.mxu0 0.0
    %339 = vmatpush1.msra.mxu0 0.0
    %340 = vmatprep.subr.mxu0 0.0
    %341 = vmatpush1.msra.mxu0 0.0
    %342 = vmatprep.subr.mxu0 0.0
    %343 = vmatpush1.msra.mxu0 0.0
    %344 = vmatprep.subr.mxu0 0.0
    %345 = vmatpush1.msra.mxu0 0.0
    %346 = vmatprep.subr.mxu0 0.0
    %347 = vmatpush1.msra.mxu0 0.0
    %348 = vmatprep.subr.mxu0 0.0
    %349 = vmatpush1.msra.mxu0 0.0
    %350 = vmatprep.subr.mxu0 0.0
    %351 = vmatpush1.msra.mxu0 0.0
    %352 = vmatprep.subr.mxu0 0.0
    %353 = vmatpush1.msra.mxu0 %v317
    %354 = vmatprep.subr.mxu0 0.0
    %355 = vmatpush1.msra.mxu0 %v316
    %356 = vmatprep.subr.mxu0 0.0
    %357 = vmatpush1.msra.mxu0 %v315
    %358 = vmatprep.subr.mxu0 0.0
    %359 = vmatpush1.msra.mxu0 %v314
    %360 = vmatprep.subr.mxu0 0.0
    %361 = vmatpush2.msra.mxu0 0.0
    %362 = vmatprep.subr.mxu0 0.0
    %363 = vmatpush2.msra.mxu0 0.0
    %364 = vmatprep.subr.mxu0 0.0
    %365 = vmatpush2.msra.mxu0 0.0
    %366 = vmatprep.subr.mxu0 0.0
    %367 = vmatpush2.msra.mxu0 0.0
    %368 = vmatprep.subr.mxu0 0.0
    %369 = vmatpush2.msra.mxu0 0.0
    %370 = vmatprep.subr.mxu0 0.0
    %371 = vmatpush2.msra.mxu0 0.0
    %372 = vmatprep.subr.mxu0 0.0
    %373 = vmatpush2.msra.mxu0 0.0
    %374 = vmatprep.subr.mxu0 0.0
    %375 = vmatpush2.msra.mxu0 0.0
    %376 = vmatprep.subr.mxu0 0.0
    %377 = vmatpush2.msra.mxu0 0.0
    %378 = vmatprep.subr.mxu0 0.0
    %379 = vmatpush2.msra.mxu0 0.0
    %380 = vmatprep.subr.mxu0 0.0
    %381 = vmatpush2.msra.mxu0 0.0
    %382 = vmatprep.subr.mxu0 0.0
    %383 = vmatpush2.msra.mxu0 0.0
    %384 = vmatprep.subr.mxu0 0.0
    %385 = vmatpush2.msra.mxu0 0.0
    %386 = vmatprep.subr.mxu0 0.0
    %387 = vmatpush2.msra.mxu0 0.0
    %388 = vmatprep.subr.mxu0 0.0
    %389 = vmatpush2.msra.mxu0 0.0
    %390 = vmatprep.subr.mxu0 0.0
    %391 = vmatpush2.msra.mxu0 0.0
    %392 = vmatprep.mubr.f32.mxu0 0.0
    %393 = vmatmul.mubr.f32.gmra.mxu0 %v326
    %v394 = vpop.f32.mrf.mxu0
    %v395 = vadd.f32 %v323, %v394
    %v396 = vpop.f32.mrf.mxu0
    %397 = vdwg.mxu0
    %v398 = vmax.f32 %v395, 0.0
    %400 = vrot.lane.b32.xlu0 %v398, 32
    %v401 = vpop.permute.xlu0 %400
    %v403 = vsel %vm153, %v227, %v401
    %v404 = vld [vmem:[%s10] sm:$0xff]
    %v405 = vld [vmem:[%s10 + $0x8] sm:$0xff]
    %v406 = vld [vmem:[%s10 + $0x10] sm:$0xff]
    %v407 = vld [vmem:[%s10 + $0x18] sm:$0xff]
    %v408 = vld [vmem:[%s10 + $0x20] sm:$0xff]
    %v409 = vld [vmem:[%s10 + $0x28] sm:$0xff]
    %v410 = vld [vmem:[%s11] sm:$0x1]
    %v412 = vlaneseq
    %v413 = vshrl.u32 %v412, 7
    %v414 = vsub.s32 0, %v413
    %v415 = vrot.slane %v410, %v414
    %vm417 = vcmask 392192
    %v419 = vsel %vm417, %v403, 0
    %421 = vmatprep.subr.mxu0 0.0
    %422 = vmatpush1.msra.mxu0 0.0
    %423 = vmatprep.subr.mxu0 0.0
    %424 = vmatpush1.msra.mxu0 0.0
    %425 = vmatprep.subr.mxu0 0.0
    %426 = vmatpush1.msra.mxu0 0.0
    %427 = vmatprep.subr.mxu0 0.0
    %428 = vmatpush1.msra.mxu0 0.0
    %429 = vmatprep.subr.mxu0 0.0
    %430 = vmatpush1.msra.mxu0 0.0
    %431 = vmatprep.subr.mxu0 0.0
    %432 = vmatpush1.msra.mxu0 0.0
    %433 = vmatprep.subr.mxu0 0.0
    %434 = vmatpush1.msra.mxu0 0.0
    %435 = vmatprep.subr.mxu0 0.0
    %436 = vmatpush1.msra.mxu0 0.0
    %437 = vmatprep.subr.mxu0 0.0
    %438 = vmatpush1.msra.mxu0 0.0
    %439 = vmatprep.subr.mxu0 0.0
    %440 = vmatpush1.msra.mxu0 0.0
    %441 = vmatprep.subr.mxu0 0.0
    %442 = vmatpush1.msra.mxu0 %v409
    %443 = vmatprep.subr.mxu0 0.0
    %444 = vmatpush1.msra.mxu0 %v408
    %445 = vmatprep.subr.mxu0 0.0
    %446 = vmatpush1.msra.mxu0 %v407
    %447 = vmatprep.subr.mxu0 0.0
    %448 = vmatpush1.msra.mxu0 %v406
    %449 = vmatprep.subr.mxu0 0.0
    %450 = vmatpush1.msra.mxu0 %v405
    %451 = vmatprep.subr.mxu0 0.0
    %452 = vmatpush1.msra.mxu0 %v404
    %453 = vmatprep.subr.mxu0 0.0
    %454 = vmatpush2.msra.mxu0 0.0
    %455 = vmatprep.subr.mxu0 0.0
    %456 = vmatpush2.msra.mxu0 0.0
    %457 = vmatprep.subr.mxu0 0.0
    %458 = vmatpush2.msra.mxu0 0.0
    %459 = vmatprep.subr.mxu0 0.0
    %460 = vmatpush2.msra.mxu0 0.0
    %461 = vmatprep.subr.mxu0 0.0
    %462 = vmatpush2.msra.mxu0 0.0
    %463 = vmatprep.subr.mxu0 0.0
    %464 = vmatpush2.msra.mxu0 0.0
    %465 = vmatprep.subr.mxu0 0.0
    %466 = vmatpush2.msra.mxu0 0.0
    %467 = vmatprep.subr.mxu0 0.0
    %468 = vmatpush2.msra.mxu0 0.0
    %469 = vmatprep.subr.mxu0 0.0
    %470 = vmatpush2.msra.mxu0 0.0
    %471 = vmatprep.subr.mxu0 0.0
    %472 = vmatpush2.msra.mxu0 0.0
    %473 = vmatprep.subr.mxu0 0.0
    %474 = vmatpush2.msra.mxu0 0.0
    %475 = vmatprep.subr.mxu0 0.0
    %476 = vmatpush2.msra.mxu0 0.0
    %477 = vmatprep.subr.mxu0 0.0
    %478 = vmatpush2.msra.mxu0 0.0
    %479 = vmatprep.subr.mxu0 0.0
    %480 = vmatpush2.msra.mxu0 0.0
    %481 = vmatprep.subr.mxu0 0.0
    %482 = vmatpush2.msra.mxu0 0.0
    %483 = vmatprep.subr.mxu0 0.0
    %484 = vmatpush2.msra.mxu0 0.0
    %485 = vmatprep.mubr.f32.mxu0 0.0
    %486 = vmatmul.mubr.f32.gmra.mxu0 %v419
    %v487 = vpop.f32.mrf.mxu0
    %v488 = vadd.f32 %v415, %v487
    %v489 = vpop.f32.mrf.mxu0
    %490 = vdwg.mxu0
    %v491 = vmax.f32 %v488, 0.0
    %v492 = vld [vmem:[%s12] sm:$0xff]
    %v493 = vld [vmem:[%s12 + $0x8] sm:$0xff]
    %v494 = vld [vmem:[%s12 + $0x10] sm:$0xff]
    %v495 = vld [vmem:[%s12 + $0x18] sm:$0xff]
    %v496 = vld [vmem:[%s12 + $0x20] sm:$0xff]
    %v497 = vld [vmem:[%s12 + $0x28] sm:$0xff]
    %v498 = vld [vmem:[%s12 + $0x30] sm:$0xff]
    %v499 = vld [vmem:[%s12 + $0x38] sm:$0xff]
    %v500 = vld [vmem:[%s13] sm:$0x1]
    %v502 = vlaneseq
    %v503 = vshrl.u32 %v502, 7
    %v504 = vsub.s32 0, %v503
    %v505 = vrot.slane %v500, %v504
    %vm507 = vcmask 523264
    %v509 = vsel %vm507, %v491, 0
    %511 = vmatprep.subr.mxu0 0.0
    %512 = vmatpush1.msra.mxu0 0.0
    %513 = vmatprep.subr.mxu0 0.0
    %514 = vmatpush1.msra.mxu0 0.0
    %515 = vmatprep.subr.mxu0 0.0
    %516 = vmatpush1.msra.mxu0 0.0
    %517 = vmatprep.subr.mxu0 0.0
    %518 = vmatpush1.msra.mxu0 0.0
    %519 = vmatprep.subr.mxu0 0.0
    %520 = vmatpush1.msra.mxu0 0.0
    %521 = vmatprep.subr.mxu0 0.0
    %522 = vmatpush1.msra.mxu0 0.0
    %523 = vmatprep.subr.mxu0 0.0
    %524 = vmatpush1.msra.mxu0 0.0
    %525 = vmatprep.subr.mxu0 0.0
    %526 = vmatpush1.msra.mxu0 0.0
    %527 = vmatprep.subr.mxu0 0.0
    %528 = vmatpush1.msra.mxu0 %v499
    %529 = vmatprep.subr.mxu0 0.0
    %530 = vmatpush1.msra.mxu0 %v498
    %531 = vmatprep.subr.mxu0 0.0
    %532 = vmatpush1.msra.mxu0 %v497
    %533 = vmatprep.subr.mxu0 0.0
    %534 = vmatpush1.msra.mxu0 %v496
    %535 = vmatprep.subr.mxu0 0.0
    %536 = vmatpush1.msra.mxu0 %v495
    %537 = vmatprep.subr.mxu0 0.0
    %538 = vmatpush1.msra.mxu0 %v494
    %539 = vmatprep.subr.mxu0 0.0
    %540 = vmatpush1.msra.mxu0 %v493
    %541 = vmatprep.subr.mxu0 0.0
    %542 = vmatpush1.msra.mxu0 %v492
    %543 = vmatprep.subr.mxu0 0.0
    %544 = vmatpush2.msra.mxu0 0.0
    %545 = vmatprep.subr.mxu0 0.0
    %546 = vmatpush2.msra.mxu0 0.0
    %547 = vmatprep.subr.mxu0 0.0
    %548 = vmatpush2.msra.mxu0 0.0
    %549 = vmatprep.subr.mxu0 0.0
    %550 = vmatpush2.msra.mxu0 0.0
    %551 = vmatprep.subr.mxu0 0.0
    %552 = vmatpush2.msra.mxu0 0.0
    %553 = vmatprep.subr.mxu0 0.0
    %554 = vmatpush2.msra.mxu0 0.0
    %555 = vmatprep.subr.mxu0 0.0
    %556 = vmatpush2.msra.mxu0 0.0
    %557 = vmatprep.subr.mxu0 0.0
    %558 = vmatpush2.msra.mxu0 0.0
    %559 = vmatprep.subr.mxu0 0.0
    %560 = vmatpush2.msra.mxu0 0.0
    %561 = vmatprep.subr.mxu0 0.0
    %562 = vmatpush2.msra.mxu0 0.0
    %563 = vmatprep.subr.mxu0 0.0
    %564 = vmatpush2.msra.mxu0 0.0
    %565 = vmatprep.subr.mxu0 0.0
    %566 = vmatpush2.msra.mxu0 0.0
    %567 = vmatprep.subr.mxu0 0.0
    %568 = vmatpush2.msra.mxu0 0.0
    %569 = vmatprep.subr.mxu0 0.0
    %570 = vmatpush2.msra.mxu0 0.0
    %571 = vmatprep.subr.mxu0 0.0
    %572 = vmatpush2.msra.mxu0 0.0
    %573 = vmatprep.subr.mxu0 0.0
    %574 = vmatpush2.msra.mxu0 0.0
    %575 = vmatprep.mubr.f32.mxu0 0.0
    %576 = vmatmul.mubr.f32.gmra.mxu0 %v509
    %v577 = vpop.f32.mrf.mxu0
    %v578 = vadd.f32 %v505, %v577
    %v579 = vpop.f32.mrf.mxu0
    %580 = vdwg.mxu0
    %v581 = vmax.f32 %v578, 0.0
    %v582 = vld [vmem:[%s14] sm:$0xff]
    %v583 = vld [vmem:[%s14 + $0x8] sm:$0xff]
    %v584 = vld [vmem:[%s14 + $0x10] sm:$0xff]
    %v585 = vld [vmem:[%s14 + $0x18] sm:$0xff]
    %v586 = vld [vmem:[%s15] sm:$0x1]
    %v588 = vlaneseq
    %v589 = vshrl.u32 %v588, 7
    %v590 = vsub.s32 0, %v589
    %v591 = vrot.slane %v586, %v590
    %v594 = vsel %vm153, %v581, 0
    %596 = vmatprep.subr.mxu0 0.0
    %597 = vmatpush1.msra.mxu0 0.0
    %598 = vmatprep.subr.mxu0 0.0
    %599 = vmatpush1.msra.mxu0 0.0
    %600 = vmatprep.subr.mxu0 0.0
    %601 = vmatpush1.msra.mxu0 0.0
    %602 = vmatprep.subr.mxu0 0.0
    %603 = vmatpush1.msra.mxu0 0.0
    %604 = vmatprep.subr.mxu0 0.0
    %605 = vmatpush1.msra.mxu0 0.0
    %606 = vmatprep.subr.mxu0 0.0
    %607 = vmatpush1.msra.mxu0 0.0
    %608 = vmatprep.subr.mxu0 0.0
    %609 = vmatpush1.msra.mxu0 0.0
    %610 = vmatprep.subr.mxu0 0.0
    %611 = vmatpush1.msra.mxu0 0.0
    %612 = vmatprep.subr.mxu0 0.0
    %613 = vmatpush1.msra.mxu0 0.0
    %614 = vmatprep.subr.mxu0 0.0
    %615 = vmatpush1.msra.mxu0 0.0
    %616 = vmatprep.subr.mxu0 0.0
    %617 = vmatpush1.msra.mxu0 0.0
    %618 = vmatprep.subr.mxu0 0.0
    %619 = vmatpush1.msra.mxu0 0.0
    %620 = vmatprep.subr.mxu0 0.0
    %621 = vmatpush1.msra.mxu0 %v585
    %622 = vmatprep.subr.mxu0 0.0
    %623 = vmatpush1.msra.mxu0 %v584
    %624 = vmatprep.subr.mxu0 0.0
    %625 = vmatpush1.msra.mxu0 %v583
    %626 = vmatprep.subr.mxu0 0.0
    %627 = vmatpush1.msra.mxu0 %v582
    %628 = vmatprep.subr.mxu0 0.0
    %629 = vmatpush2.msra.mxu0 0.0
    %630 = vmatprep.subr.mxu0 0.0
    %631 = vmatpush2.msra.mxu0 0.0
    %632 = vmatprep.subr.mxu0 0.0
    %633 = vmatpush2.msra.mxu0 0.0
    %634 = vmatprep.subr.mxu0 0.0
    %635 = vmatpush2.msra.mxu0 0.0
    %636 = vmatprep.subr.mxu0 0.0
    %637 = vmatpush2.msra.mxu0 0.0
    %638 = vmatprep.subr.mxu0 0.0
    %639 = vmatpush2.msra.mxu0 0.0
    %640 = vmatprep.subr.mxu0 0.0
    %641 = vmatpush2.msra.mxu0 0.0
    %642 = vmatprep.subr.mxu0 0.0
    %643 = vmatpush2.msra.mxu0 0.0
    %644 = vmatprep.subr.mxu0 0.0
    %645 = vmatpush2.msra.mxu0 0.0
    %646 = vmatprep.subr.mxu0 0.0
    %647 = vmatpush2.msra.mxu0 0.0
    %648 = vmatprep.subr.mxu0 0.0
    %649 = vmatpush2.msra.mxu0 0.0
    %650 = vmatprep.subr.mxu0 0.0
    %651 = vmatpush2.msra.mxu0 0.0
    %652 = vmatprep.subr.mxu0 0.0
    %653 = vmatpush2.msra.mxu0 0.0
    %654 = vmatprep.subr.mxu0 0.0
    %655 = vmatpush2.msra.mxu0 0.0
    %656 = vmatprep.subr.mxu0 0.0
    %657 = vmatpush2.msra.mxu0 0.0
    %658 = vmatprep.subr.mxu0 0.0
    %659 = vmatpush2.msra.mxu0 0.0
    %660 = vmatprep.mubr.f32.mxu0 0.0
    %661 = vmatmul.mubr.f32.gmra.mxu0 %v594
    %v662 = vpop.f32.mrf.mxu0
    %v663 = vadd.f32 %v591, %v662
    %v664 = vpop.f32.mrf.mxu0
    %665 = vdwg.mxu0
    %v666 = vmax.f32 %v663, 0.0
    %v667 = vand.u32 2147483647, %v663
    %v668 = vsub.f32 0.0, %v667
    %v669 = vmul.f32 %v668, 1.442695
    %v670 = vpow.pop %v669
    %v671 = vadd.f32 %v670, 1.0
    %v672 = vlog2.pop %v671
    %v673 = vmul.f32 %v672, 0.6931472
    %v674 = vmul.f32 -0.5, %v670
    %v675 = vadd.f32 %v674, 1.0
    %v676 = vmul.f32 %v675, %v670
    %v677 = vand.u32 2147483647, %v670
    %vm678 = vcmp.lt.f32.partialorder %v677, 0.0004427343
    %v679 = vsel %vm678, %v676, %v673
    %v680 = vadd.f32 %v666, %v679
    %v681 = vadd.f32 %v680, 1e-06
    %v682 = vrsqrt.pop %v681
    %v683 = vmul.f32 %v681, %v682
    %vm684 = vcmp.eq.f32.partialorder %v681, inf
    %v685 = vsel %vm684, %v681, %v683
    %vm686 = vcmp.eq.f32.partialorder %v681, 0.0
    %v687 = vand.u32 %v681, 2147483648
    %v688 = vsel %vm686, %v687, %v685
    %v689 = vld [vmem:[%s16] sm:$0xff]
    %691 = vrot.lane.b32.xlu0 %v689, 8
    %v692 = vpop.permute.xlu0 %691
    %v694 = vmul.f32 %v688, %v692
    %696 = vrot.lane.b32.xlu0 %v694, 120
    %v697 = vpop.permute.xlu0 %696
    %v699 = vadd.f32 %v663, %v697
    %701 = vrot.lane.b32.xlu0 %v663, 8
    %v702 = vpop.permute.xlu0 %701
    %705 = vrot.lane.b32.xlu0 %v681, 8
    %v706 = vpop.permute.xlu0 %705
    %vm708 = vcmask 64512
    %v709 = vsel %vm708, %v699, %v702
    %v710 = vsel %vm67, %v709, %v706
    %v711 = vsel %vm239, %v710, 0.0
    %712 = vst [vmem:[#allocation2] sm:$0xff] %v711
    // Predicated region
    $region70: #{tpu_custom_call.1} parent=1 // pred_check
      _
    $region71: #{tpu_custom_call.1} parent=1 // pred_check_branch
      %714 = sbr.rel (0) target = $region73
    $region72: #{tpu_custom_call.1} parent=1 // pred_region
      %s716 = ssub.s32 128, 128
      %717 = vsyncadd [#allocation3], %s716
      %s719 = sshll.u32 [#allocation2], 4
      %s720 = int_to_ptr.vmem [resolvable:$true] %s719
      %722 = dma.vmem_to_hbm [thread:$0]  %s720, 128, %s17, [#allocation3]
    $region73: #{tpu_custom_call.1} parent=1 // pred_fallthru
      _
    // Predicated region
    $region74: #{tpu_custom_call.1} parent=1 // pred_check
      _
    $region75: #{tpu_custom_call.1} parent=1 // pred_check_branch
      %724 = sbr.rel (0) target = $region77
    $region76: #{tpu_custom_call.1} parent=1 // pred_region
      %725 = dma.done [#allocation3], 128
    $region77: #{tpu_custom_call.1} parent=1 // pred_fallthru
      _
    %726 = vsyncpa [#allocation3], 1

</llo_original>
